<compile_context>
chip_gen: v5e
topology: v5e:2x2
jax: 0.10.0
libtpu: 0.0.40
codegen_flags: <defaults>
</compile_context>

<pallas_src>
import functools
import math

import jax
import jax.numpy as jnp
import numpy as np
from jax import lax
from jax.experimental import pallas as pl
from jax.experimental.pallas import tpu as pltpu


def _avg_pool_kernel(x_ref, o_ref, *, f, ho, ho_pad, chunks, mm_dtype, inv_area):
    """x_ref: (B, H, W) slab of flattened NCHW planes; o_ref: (B, Ho, Wo)."""
    b = x_ref.shape[0]
    w = x_ref.shape[2]

    # --- H (sublane) pooling: f strided-sublane VPU adds, f32 accumulation.
    acc = x_ref[:, pl.ds(0, ho, stride=f), :].astype(jnp.float32)
    for k in range(1, f):
        acc = acc + x_ref[:, pl.ds(k, ho, stride=f), :].astype(jnp.float32)

    # Pad Ho up to a sublane multiple so the (B, Ho) -> B*Ho merge below is a pure view
    # (avoids a per-step sublane relayout when Ho % 8 != 0).  Pad rows are zero and are
    # sliced off after the matmul.
    if ho_pad != ho:
        acc = jnp.concatenate(
            [acc, jnp.zeros((b, ho_pad - ho, w), jnp.float32)], axis=1)

    lhs = acc.reshape(b * ho_pad, w)
    if mm_dtype != jnp.float32:
        # bf16 MXU path: partial sums rounded to bf16 here (see precision note above).
        lhs = lhs.astype(mm_dtype)

    # --- W (lane) pooling: block-diagonal MXU matmuls, one per static W chunk.
    # The per-chunk pooling matrix (1.0 inside each window, 0.0 elsewhere) is built
    # in-kernel from iota comparisons; cached per shape so it is emitted once per step.
    pw_cache = {}

    def pool_mat(w_len, wo_len):
        key = (w_len, wo_len)
        if key not in pw_cache:
            r = lax.broadcasted_iota(jnp.int32, (w_len, wo_len), 0)
            c = lax.broadcasted_iota(jnp.int32, (w_len, wo_len), 1)
            inside = jnp.logical_and(r >= c * f, r < (c + 1) * f)
            pw_cache[key] = jnp.where(inside, jnp.float32(1.0),
                                      jnp.float32(0.0)).astype(mm_dtype)
        return pw_cache[key]

    for (w0, wl, o0, ol) in chunks:
        part = jnp.dot(lhs[:, w0:w0 + wl], pool_mat(wl, ol),
                       preferred_element_type=jnp.float32)
        part = part * jnp.float32(inv_area)            # single f32 scale by 1/f^2
        part = part.reshape(b, ho_pad, ol)[:, :ho, :]  # drop sublane pad rows
        o_ref[:, :, o0:o0 + ol] = part.astype(o_ref.dtype)


def _w_chunks(W, Wo, f):
    """Static block-diagonal chunking of the lane-pooling matmul.

    Chunks are ~512 lanes wide and a multiple of lcm(128, f) so pooling windows never
    straddle a chunk boundary and chunk starts stay lane-aligned.  Returns tuples of
    (w_start, w_len, wo_start, wo_len)."""
    if Wo <= 0:
        return ()
    unit = (128 * f) // math.gcd(128, f)      # lcm(128, f)
    wc = unit * max(1, 512 // unit)
    if wc >= W:
        return ((0, W, 0, Wo),)
    chunks = []
    for w0 in range(0, W, wc):
        o0 = w0 // f
        ol = min(wc // f, Wo - o0)
        if ol <= 0:
            break
        chunks.append((w0, min(wc, W - w0), o0, ol))
    return tuple(chunks)


def _choose_batch(nc, work_bytes_per_plane, budget_bytes,
                  min_steps=8, min_slab_bytes=2 << 20):
    """Planes per grid step.

    Sized from the whole per-plane working set against a VMEM budget, then shrunk --
    but never below ~min_slab_bytes of working set -- so the grid has enough steps
    for input/output double-buffering and load-balances both v7x TensorCores
    (prefer >= min_steps steps and an even step count)."""
    work_bytes_per_plane = max(int(work_bytes_per_plane), 1)
    b = max(1, min(nc, budget_bytes // work_bytes_per_plane))

    def steps(bb):
        return -(-nc // bb)

    while (b > 1 and steps(b) < min_steps
           and ((b + 1) // 2) * work_bytes_per_plane >= min_slab_bytes):
        b = (b + 1) // 2

    s = steps(b)
    if s > 1 and s % 2 == 1:
        b2 = -(-nc // (s + 1))
        if b2 >= 1 and steps(b2) % 2 == 0:
            b = b2
    return b


def _vmem_capacity_bytes():
    """Best-effort trace-time VMEM capacity query; conservative v7x fallback."""
    try:
        info = pltpu.get_tpu_info()
        for name in ("vmem_capacity_bytes", "vmem_size_bytes", "vmem_bytes"):
            cap = getattr(info, name, None)
            if cap:
                return int(cap)
    except Exception:
        pass
    return 64 * 1024 * 1024


@functools.partial(jax.jit, static_argnames=("subsampling_factor", "_max_batch_planes"))
def resolution_subsampling(x: jnp.ndarray, subsampling_factor: int,
                           _max_batch_planes: int = None) -> jnp.ndarray:
    """Equivalent of ResolutionSubsampling(subsampling_factor).forward(x) for NCHW x.

    `_max_batch_planes` is a test-only knob to force small plane batches (exercises the
    partial trailing grid block)."""
    f = int(subsampling_factor)
    if f <= 1:
        return x

    N, C, H, W = x.shape
    Ho, Wo = H // f, W // f
    if Ho == 0 or Wo == 0:
        return jnp.zeros((N, C, Ho, Wo), dtype=x.dtype)

    mm_dtype = jnp.bfloat16 if x.dtype == jnp.bfloat16 else jnp.float32
    mm_itemsize = jnp.dtype(mm_dtype).itemsize
    itemsize = x.dtype.itemsize

    NC = N * C
    x_flat = x.reshape(NC, H, W)

    # Generation-aware VMEM budgets (v5e/v6e: 128 MiB physical, v7x: 64 MiB per TC).
    cap = _vmem_capacity_bytes()
    if cap >= 100 * (1 << 20):
        vmem_limit = 96 * (1 << 20)
        working_budget = 48 * (1 << 20)
    else:
        vmem_limit = 56 * (1 << 20)
        working_budget = 24 * (1 << 20)

    ho_pad = Ho if Ho % 8 == 0 else ((Ho + 7) // 8) * 8

    # Whole in-kernel working set per plane: 2x double-buffered input, f32 accumulator,
    # mm_dtype lhs (only when a cast copy is made), f32 matmul result, 2x double-buffered
    # output block.
    work_per_plane = (
        2 * H * W * itemsize
        + ho_pad * W * 4
        + (ho_pad * W * mm_itemsize if mm_dtype != jnp.float32 else 0)
        + ho_pad * Wo * 4
        + 2 * Ho * Wo * itemsize
    )

    B = _choose_batch(NC, work_per_plane, working_budget)
    if _max_batch_planes is not None:
        B = max(1, min(B, int(_max_batch_planes)))
    if B == 1:
        ho_pad = Ho  # (1, Ho, W) -> (Ho, W) merge is a squeeze; no sublane pad needed.

    # Partial last block is fine: planes are independent, OOB rows are never stored.
    grid_len = pl.cdiv(NC, B)

    chunks = _w_chunks(W, Wo, f)

    flops_per_plane = (f - 1) * Ho * W
    for (_, wl, _, ol) in chunks:
        flops_per_plane += 2 * ho_pad * wl * ol
    cost = pl.CostEstimate(
        flops=int(NC * flops_per_plane),
        transcendentals=0,
        bytes_accessed=int(NC * (H * W * itemsize + Ho * Wo * itemsize)),
    )

    kernel = functools.partial(
        _avg_pool_kernel, f=f, ho=Ho, ho_pad=ho_pad, chunks=chunks,
        mm_dtype=mm_dtype, inv_area=1.0 / (f * f))

    out_flat = pl.pallas_call(
        kernel,
        out_shape=jax.ShapeDtypeStruct((NC, Ho, Wo), x.dtype),
        grid_spec=pltpu.PrefetchScalarGridSpec(
            num_scalar_prefetch=0,
            grid=(grid_len,),
            in_specs=[pl.BlockSpec((B, H, W), lambda i: (i, 0, 0))],
            out_specs=pl.BlockSpec((B, Ho, Wo), lambda i: (i, 0, 0)),
        ),
        compiler_params=pltpu.CompilerParams(
            dimension_semantics=("parallel",),
            vmem_limit_bytes=vmem_limit,
        ),
        cost_estimate=cost,
    )(x_flat)

    # TODO(synk): output lane width is Wo (<128 for small feature maps) so final stores are
    # masked; bounded by <= 1/f^2 of total traffic, so a lane-dense (non-NCHW) output layout
    # is only worth pursuing if the consumer's layout is free to change.
    return out_flat.reshape(N, C, Ho, Wo)


def _reference(x: jnp.ndarray, f: int) -> jnp.ndarray:
    """Plain-JAX reference of avg_pool2d(kernel=stride=f), floor mode, no padding."""
    if f <= 1:
        return x
    N, C, H, W = x.shape
    Ho, Wo = H // f, W // f
    xc = x[:, :, : Ho * f, : Wo * f].astype(jnp.float32)
    xc = xc.reshape(N, C, Ho, f, Wo, f)
    return xc.mean(axis=(3, 5))


if __name__ == "__main__":
    key = jax.random.PRNGKey(0)

    # f32, divisible spatial dims.
    N, C, H, W, f = 2, 4, 16, 16, 2
    x = jax.random.normal(key, (N, C, H, W), dtype=jnp.float32)
    out = jax.block_until_ready(resolution_subsampling(x, f))
    ref = _reference(x, f)
    assert out.shape == (N, C, H // f, W // f), out.shape
    assert np.allclose(np.asarray(out), np.asarray(ref), atol=1e-5, rtol=1e-5)

    # bf16 input stays bf16 on the MXU (f32 accumulation of the matmul + single f32 scale).
    xb = x.astype(jnp.bfloat16)
    outb = jax.block_until_ready(resolution_subsampling(xb, f))
    refb = _reference(xb.astype(jnp.float32), f)
    assert outb.dtype == jnp.bfloat16
    assert np.allclose(np.asarray(outb, dtype=np.float32), np.asarray(refb),
                       atol=3e-2, rtol=3e-2)

    # Non-divisible spatial dims + odd factor: floor cropping and the Ho%8 sublane-pad path.
    x2 = jax.random.normal(jax.random.PRNGKey(1), (1, 3, 20, 20), dtype=jnp.float32)
    out2 = jax.block_until_ready(resolution_subsampling(x2, 3))
    ref2 = _reference(x2, 3)
    assert out2.shape == (1, 3, 6, 6), out2.shape
    assert np.allclose(np.asarray(out2), np.asarray(ref2), atol=1e-5, rtol=1e-5)

    # Wide W exercises the block-diagonal (chunked) lane-pooling matmul + Ho padding.
    x3 = jax.random.normal(jax.random.PRNGKey(2), (2, 2, 8, 1280), dtype=jnp.float32)
    out3 = jax.block_until_ready(resolution_subsampling(x3, 2))
    ref3 = _reference(x3, 2)
    assert out3.shape == (2, 2, 4, 640), out3.shape
    assert np.allclose(np.asarray(out3), np.asarray(ref3), atol=1e-5, rtol=1e-5)

    # NC not divisible by B: forces a partial trailing grid block (masked writeback).
    x4 = jax.random.normal(jax.random.PRNGKey(3), (1, 7, 16, 16), dtype=jnp.float32)
    out4 = jax.block_until_ready(resolution_subsampling(x4, 2, _max_batch_planes=2))
    ref4 = _reference(x4, 2)
    assert out4.shape == (1, 7, 8, 8), out4.shape
    assert np.allclose(np.asarray(out4), np.asarray(ref4), atol=1e-5, rtol=1e-5)

    # f = 1 passthrough.
    out1 = jax.block_until_ready(resolution_subsampling(x, 1))
    assert np.array_equal(np.asarray(out1), np.asarray(x))

    print("KERNEL_OK")
</pallas_src>

<mosaic_0001>
module attributes {stable_mosaic.version = 11 : i64} {
  func.func @_avg_pool_kernel(%arg0: i32, %arg1: memref<8x16x16xf32, #tpu.memory_space<vmem>>, %arg2: memref<8x8x8xf32, #tpu.memory_space<vmem>>) attributes {dimension_semantics = [#tpu.dimension_semantics<parallel>], iteration_bounds = array<i64: 1>, scalar_prefetch = 0 : i64, scratch_operands = 0 : i64, tpu.core_type = #tpu.core_type<tc>, window_params = [{transform_indices = @transform_0, window_bounds = array<i64: 8, 16, 16>}, {transform_indices = @transform_1, window_bounds = array<i64: 8, 8, 8>}]} {
    %c0 = arith.constant 0 : index
    %c0_0 = arith.constant 0 : index
    %c0_1 = arith.constant 0 : index
    %0 = tpu.strided_load %arg1[%c0, %c0_0, %c0_1] {strides = array<i32: 1, 2, 1>} : memref<8x16x16xf32, #tpu.memory_space<vmem>>, vector<8x8x16xf32>
    %c0_2 = arith.constant 0 : index
    %c1 = arith.constant 1 : index
    %c0_3 = arith.constant 0 : index
    %1 = tpu.strided_load %arg1[%c0_2, %c1, %c0_3] {strides = array<i32: 1, 2, 1>} : memref<8x16x16xf32, #tpu.memory_space<vmem>>, vector<8x8x16xf32>
    %2 = arith.addf %0, %1 : vector<8x8x16xf32>
    %3 = vector.shape_cast %2 : vector<8x8x16xf32> to vector<64x16xf32>
    %4 = tpu.iota {dimensions = array<i32: 0>} : vector<16x8xi32>
    %5 = tpu.iota {dimensions = array<i32: 1>} : vector<16x8xi32>
    %c2_i32 = arith.constant 2 : i32
    %6 = vector.broadcast %c2_i32 : i32 to vector<16x8xi32>
    %7 = arith.muli %5, %6 : vector<16x8xi32>
    %8 = arith.cmpi sge, %4, %7 : vector<16x8xi32>
    %c1_i32 = arith.constant 1 : i32
    %9 = vector.broadcast %c1_i32 : i32 to vector<16x8xi32>
    %10 = arith.addi %5, %9 : vector<16x8xi32>
    %c2_i32_4 = arith.constant 2 : i32
    %11 = vector.broadcast %c2_i32_4 : i32 to vector<16x8xi32>
    %12 = arith.muli %10, %11 : vector<16x8xi32>
    %13 = arith.cmpi slt, %4, %12 : vector<16x8xi32>
    %14 = arith.andi %8, %13 : vector<16x8xi1>
    %cst = arith.constant 1.000000e+00 : f32
    %cst_5 = arith.constant 0.000000e+00 : f32
    %15 = vector.broadcast %cst : f32 to vector<16x8xf32>
    %16 = vector.broadcast %cst_5 : f32 to vector<16x8xf32>
    %17 = arith.select %14, %15, %16 : vector<16x8xi1>, vector<16x8xf32>
    %cst_6 = arith.constant dense<0.000000e+00> : vector<64x8xf32>
    %18 = tpu.matmul %3, %17, %cst_6 {dimension_numbers = #tpu.dot_dimension_numbers<[1], [0], [0], [1], [0, 0, 1, 1], [], []>} : vector<64x16xf32>, vector<16x8xf32>, vector<64x8xf32> -> vector<64x8xf32>
    %cst_7 = arith.constant 2.500000e-01 : f32
    %19 = vector.broadcast %cst_7 : f32 to vector<64x8xf32>
    %20 = arith.mulf %18, %19 : vector<64x8xf32>
    %21 = vector.shape_cast %20 : vector<64x8xf32> to vector<8x8x8xf32>
    %c0_8 = arith.constant 0 : index
    %c0_9 = arith.constant 0 : index
    %c0_10 = arith.constant 0 : index
    %22 = vector.load %arg2[%c0_8, %c0_9, %c0_10] : memref<8x8x8xf32, #tpu.memory_space<vmem>>, vector<8x8x8xf32>
    tpu.vector_store %arg2[%c0_8, %c0_9, %c0_10], %21 {strides = array<i32>} : memref<8x8x8xf32, #tpu.memory_space<vmem>>, vector<8x8x8xf32>,
    return
  }
  func.func @transform_0(%arg0: i32) -> (i32, i32, i32) {
    %c0_i32 = arith.constant 0 : i32
    %c0_i32_0 = arith.constant 0 : i32
    %c0_i32_1 = arith.constant 0 : i32
    return %arg0, %c0_i32, %c0_i32_0 : i32, i32, i32
  }
  func.func @transform_1(%arg0: i32) -> (i32, i32, i32) {
    %c0_i32 = arith.constant 0 : i32
    %c0_i32_0 = arith.constant 0 : i32
    %c0_i32_1 = arith.constant 0 : i32
    return %arg0, %c0_i32, %c0_i32_0 : i32, i32, i32
  }
}

</mosaic_0001>

<llo_original>
// kernel: resolution_subsampling.1
$region0: #{resolution_subsampling.1}
  #allocation0 [shape = 'u32[]', space=smem, size = 0x4, offset = 0x4, fixed_abs, tag = 'smem constant byte address 0x4 - core index']
  #allocation1 [shape = 'u32[72,128]{1,0:T(1,128)}', space=vmem, size = 0x9000, scoped, tag = 'internal scratch']
  %s0 = inlined_call_operand.hbm [shape: f32[8,16,16], index: 0, kind: input, shape index: {}]
  %s1 = inlined_call_operand.hbm [shape: f32[8,8,8], index: 1, kind: output, shape index: {}]
  %s2 = sld [smem:[#allocation0]]
  $region18: #{resolution_subsampling.1} parent=0
    _
  %s4 = ssub.s32 1, %s2
  %s5 = scalar_select 0, %s4, %s2
  $region1: #{resolution_subsampling.1} parent=0
    #allocation2 [shape = 'u8[65536]{0}', space=vmem, size = 0x10000, scoped, tag = 'input window, operand 0, single buffered']
    #allocation3 [shape = 's32[1]{0}', space=sflag, size = 0x4, scoped, tag = 'scoped memory for resolution_subsampling.1']
    #allocation4 [shape = 's32[1]{0}', space=sflag, size = 0x4, scoped, tag = 'scoped memory for resolution_subsampling.1']
    #allocation5 [shape = 'u8[32768]{0}', space=vmem, size = 0x8000, scoped, tag = 'output window, operand 0, single buffered']
    %6 = vsyncpa [#allocation3], 0
    %7 = vsyncpa [#allocation4], 0
    // Predicated region
    $region2: #{resolution_subsampling.1} parent=1 // pred_check
      _
    $region3: #{resolution_subsampling.1} parent=1 // pred_check_branch
      %9 = sbr.rel (0) target = $region5
    $region4: #{resolution_subsampling.1} parent=1 // pred_region
      %11 = vsyncadd [#allocation3], 0
      %s12 = sshll.u32 %s0, 4
      %s13 = int_to_ptr.hbm [resolvable:$true] %s12
      %s14 = sshll.u32 [#allocation2], 4
      %s15 = int_to_ptr.vmem [resolvable:$true] %s14
      %20 = dma.hbm_to_vmem [thread:$0]  %s13, 2048, %s15, [#allocation3], 128, 128, 8
    $region5: #{resolution_subsampling.1} parent=1 // pred_fallthru
      _
    // Predicated region
    $region6: #{resolution_subsampling.1} parent=1 // pred_check
      _
    $region7: #{resolution_subsampling.1} parent=1 // pred_check_branch
      %22 = sbr.rel (0) target = $region9
    $region8: #{resolution_subsampling.1} parent=1 // pred_region
      %24 = dma.done [#allocation3], 2048
    $region9: #{resolution_subsampling.1} parent=1 // pred_fallthru
      _
    %v25 = vld [vmem:[#allocation2] ss:$2 sm:$0xff]
    %s26 = scalar_lea.vmem [#allocation2], 16
    %v27 = vld [vmem:[%s26] ss:$2 sm:$0xff]
    %s28 = scalar_lea.vmem [#allocation2], 32
    %v29 = vld [vmem:[%s28] ss:$2 sm:$0xff]
    %s30 = scalar_lea.vmem [#allocation2], 48
    %v31 = vld [vmem:[%s30] ss:$2 sm:$0xff]
    %s32 = scalar_lea.vmem [#allocation2], 64
    %v33 = vld [vmem:[%s32] ss:$2 sm:$0xff]
    %s34 = scalar_lea.vmem [#allocation2], 80
    %v35 = vld [vmem:[%s34] ss:$2 sm:$0xff]
    %s36 = scalar_lea.vmem [#allocation2], 96
    %v37 = vld [vmem:[%s36] ss:$2 sm:$0xff]
    %s38 = scalar_lea.vmem [#allocation2], 112
    %v39 = vld [vmem:[%s38] ss:$2 sm:$0xff]
    %s40 = scalar_lea.vmem [#allocation2], 1
    %v41 = vld [vmem:[%s40] ss:$2 sm:$0xff]
    %s42 = scalar_lea.vmem [#allocation2], 17
    %v43 = vld [vmem:[%s42] ss:$2 sm:$0xff]
    %s44 = scalar_lea.vmem [#allocation2], 33
    %v45 = vld [vmem:[%s44] ss:$2 sm:$0xff]
    %s46 = scalar_lea.vmem [#allocation2], 49
    %v47 = vld [vmem:[%s46] ss:$2 sm:$0xff]
    %s48 = scalar_lea.vmem [#allocation2], 65
    %v49 = vld [vmem:[%s48] ss:$2 sm:$0xff]
    %s50 = scalar_lea.vmem [#allocation2], 81
    %v51 = vld [vmem:[%s50] ss:$2 sm:$0xff]
    %s52 = scalar_lea.vmem [#allocation2], 97
    %v53 = vld [vmem:[%s52] ss:$2 sm:$0xff]
    %s54 = scalar_lea.vmem [#allocation2], 113
    %v55 = vld [vmem:[%s54] ss:$2 sm:$0xff]
    %v56 = vadd.f32 %v25, %v41
    %v57 = vadd.f32 %v27, %v43
    %v58 = vadd.f32 %v29, %v45
    %v59 = vadd.f32 %v31, %v47
    %v60 = vadd.f32 %v33, %v49
    %v61 = vadd.f32 %v35, %v51
    %v62 = vadd.f32 %v37, %v53
    %v63 = vadd.f32 %v39, %v55
    %v64 = vlaneseq
    %v65 = vshrl.u32 %v64, 7
    %v66 = vadd.s32 %v65, 8
    %v67 = vlaneseq
    %v68 = vand.u32 %v67, 127
    %v69 = vmul.u32 %v68, 2
    %vm70 = vcmp.ge.s32.totalorder %v65, %v69
    %vm71 = vcmp.ge.s32.totalorder %v66, %v69
    %v72 = vadd.s32 %v68, 1
    %v73 = vmul.u32 %v72, 2
    %vm74 = vcmp.lt.s32.totalorder %v65, %v73
    %vm75 = vcmp.lt.s32.totalorder %v66, %v73
    %vm76 = vmand %vm70, %vm74
    %vm77 = vmand %vm71, %vm75
    %v78 = vsel %vm76, 1.0, 0.0
    %v79 = vsel %vm77, 1.0, 0.0
    %vm80 = vcmask 130048
    %v82 = vsel %vm80, %v56, 0
    %v85 = vsel %vm80, %v57, 0
    %v88 = vsel %vm80, %v58, 0
    %v91 = vsel %vm80, %v59, 0
    %v94 = vsel %vm80, %v60, 0
    %v97 = vsel %vm80, %v61, 0
    %v100 = vsel %vm80, %v62, 0
    %v103 = vsel %vm80, %v63, 0
    %105 = vmatpush.msra.mxu0 0.0
    %106 = vmatpush.msra.mxu0 0.0
    %107 = vmatpush.msra.mxu0 0.0
    %108 = vmatpush.msra.mxu0 0.0
    %109 = vmatpush.msra.mxu0 0.0
    %110 = vmatpush.msra.mxu0 0.0
    %111 = vmatpush.msra.mxu0 0.0
    %112 = vmatpush.msra.mxu0 0.0
    %113 = vmatpush.msra.mxu0 0.0
    %114 = vmatpush.msra.mxu0 0.0
    %115 = vmatpush.msra.mxu0 0.0
    %116 = vmatpush.msra.mxu0 0.0
    %117 = vmatpush.msra.mxu0 0.0
    %118 = vmatpush.msra.mxu0 0.0
    %119 = vmatpush.msra.mxu0 %v79
    %120 = vmatpush.msra.mxu0 %v78
    %121 = vmatmul.f32.gmra.mxu0 %v82
    %v122 = vpop.f32.mrf.mxu0
    %v123 = vadd.f32 0.0, %v122
    %124 = vmatmul.f32.gmra.mxu0 %v85
    %v125 = vpop.f32.mrf.mxu0
    %v126 = vadd.f32 0.0, %v125
    %127 = vmatmul.f32.gmra.mxu0 %v88
    %v128 = vpop.f32.mrf.mxu0
    %v129 = vadd.f32 0.0, %v128
    %130 = vmatmul.f32.gmra.mxu0 %v91
    %v131 = vpop.f32.mrf.mxu0
    %v132 = vadd.f32 0.0, %v131
    %133 = vmatmul.f32.gmra.mxu0 %v94
    %v134 = vpop.f32.mrf.mxu0
    %v135 = vadd.f32 0.0, %v134
    %136 = vmatmul.f32.gmra.mxu0 %v97
    %v137 = vpop.f32.mrf.mxu0
    %v138 = vadd.f32 0.0, %v137
    %139 = vmatmul.f32.gmra.mxu0 %v100
    %v140 = vpop.f32.mrf.mxu0
    %v141 = vadd.f32 0.0, %v140
    %142 = vmatmul.f32.gmra.mxu0 %v103
    %v143 = vpop.f32.mrf.mxu0
    %v144 = vadd.f32 0.0, %v143
    %145 = vdwg.mxu0
    %v146 = vmul.f32 %v123, 0.25
    %v147 = vmul.f32 %v126, 0.25
    %v148 = vmul.f32 %v129, 0.25
    %v149 = vmul.f32 %v132, 0.25
    %v150 = vmul.f32 %v135, 0.25
    %v151 = vmul.f32 %v138, 0.25
    %v152 = vmul.f32 %v141, 0.25
    %v153 = vmul.f32 %v144, 0.25
    %vm154 = vcmask 64512
    %155 = vst.msk [vmem:[#allocation5] sm:$0xff] %vm154, %v146
    %156 = vst.msk [vmem:[#allocation5 + $0x8] sm:$0xff] %vm154, %v147
    %157 = vst.msk [vmem:[#allocation5 + $0x10] sm:$0xff] %vm154, %v148
    %158 = vst.msk [vmem:[#allocation5 + $0x18] sm:$0xff] %vm154, %v149
    %159 = vst.msk [vmem:[#allocation5 + $0x20] sm:$0xff] %vm154, %v150
    %160 = vst.msk [vmem:[#allocation5 + $0x28] sm:$0xff] %vm154, %v151
    %161 = vst.msk [vmem:[#allocation5 + $0x30] sm:$0xff] %vm154, %v152
    %162 = vst.msk [vmem:[#allocation5 + $0x38] sm:$0xff] %vm154, %v153
    // Predicated region
    $region10: #{resolution_subsampling.1} parent=1 // pred_check
      _
    $region11: #{resolution_subsampling.1} parent=1 // pred_check_branch
      %164 = sbr.rel (0) target = $region13
    $region12: #{resolution_subsampling.1} parent=1 // pred_region
      %166 = vsyncadd [#allocation4], 0
      %s167 = sshll.u32 [#allocation5], 4
      %s168 = int_to_ptr.vmem [resolvable:$true] %s167
      %s169 = sshll.u32 %s1, 4
      %s170 = int_to_ptr.hbm [resolvable:$true] %s169
      %175 = dma.vmem_to_hbm [thread:$0]  %s168, 1024, %s170, [#allocation4], 128, 128, 8
    $region13: #{resolution_subsampling.1} parent=1 // pred_fallthru
      _
    // Predicated region
    $region14: #{resolution_subsampling.1} parent=1 // pred_check
      _
    $region15: #{resolution_subsampling.1} parent=1 // pred_check_branch
      %177 = sbr.rel (0) target = $region17
    $region16: #{resolution_subsampling.1} parent=1 // pred_region
      %179 = dma.done [#allocation4], 1024
    $region17: #{resolution_subsampling.1} parent=1 // pred_fallthru
      _
    %180 = vsyncpa [#allocation3], 1
    %181 = vsyncpa [#allocation4], 1

</llo_original>
